<compile_context>
chip_gen: v5e
topology: v5e:2x2
jax: 0.10.0
libtpu: 0.0.40
codegen_flags: <defaults>
</compile_context>

<pallas_src>
import math

import jax
import jax.numpy as jnp
from jax.experimental import pallas as pl
from jax.experimental.pallas import tpu as pltpu


# -----------------------------------------------------------------------------
# One-time buffer construction (mirrors the PyTorch __init__ exactly).
# -----------------------------------------------------------------------------
def build_pe(d_model: int, max_len: int = 5000) -> jnp.ndarray:
    """Sinusoidal table, shape (max_len, 1, d_model) float32 — the PyTorch buffer."""
    assert d_model % 2 == 0, "interleaved sin/cos requires even d_model"
    position = jnp.arange(0, max_len, dtype=jnp.float32)[:, None]            # (L, 1)
    div_term = jnp.exp(
        jnp.arange(0, d_model, 2, dtype=jnp.float32)
        * (-math.log(10000.0) / d_model)
    )                                                                        # (D/2,)
    pe = jnp.zeros((max_len, d_model), dtype=jnp.float32)
    pe = pe.at[:, 0::2].set(jnp.sin(position * div_term))
    pe = pe.at[:, 1::2].set(jnp.cos(position * div_term))
    return pe[:, None, :]                                                    # (L, 1, D)


# -----------------------------------------------------------------------------
# Kernel: one sequence tile per grid step, pure VPU add with batch broadcast.
# -----------------------------------------------------------------------------
def _pe_add_kernel(x_ref, pe_ref, o_ref):
    # x_ref / o_ref: (ts, B, D) tiles; pe_ref: (ts, 1, D) tile (broadcasts over B).
    o_ref[...] = x_ref[...].astype(o_ref.dtype) + pe_ref[...].astype(o_ref.dtype)


# -----------------------------------------------------------------------------
# Generation-aware tile sizing.
# -----------------------------------------------------------------------------
def _round_up(x: int, m: int) -> int:
    return ((x + m - 1) // m) * m


def _vmem_capacity_bytes() -> int:
    try:
        return int(pltpu.get_tpu_info().vmem_capacity_bytes)
    except Exception:
        return 64 * 1024 * 1024  # conservative fallback (v7x per-TC capacity)


def _choose_seq_tile(s, b, d, x_dtype, pe_dtype, out_dtype, vmem_cap) -> int:
    """Sequence-tile size so the double-buffered pipeline fits comfortably in VMEM."""
    lane_d = _round_up(d, 128)

    def row_bytes(n_sublane, dtype):
        isz = jnp.dtype(dtype).itemsize
        pack = max(1, 32 // isz)            # sublane packing: 8 f32 / 16 bf16 / 32 int8
        return _round_up(n_sublane, pack) * lane_d * isz

    # Padded VMEM bytes per sequence row across x tile + out tile + pe tile.
    per_row = row_bytes(b, x_dtype) + row_bytes(b, out_dtype) + row_bytes(1, pe_dtype)

    budget = max(2 * 1024 * 1024, vmem_cap // 4)   # total pipeline footprint target
    ts = budget // (2 * per_row)                   # 2-deep double buffering
    ts = max(8, (ts // 8) * 8)
    return s if ts >= s else ts


# -----------------------------------------------------------------------------
# Forward: x (S, B, D) + pe[:S] broadcast over batch.
# -----------------------------------------------------------------------------
@jax.jit
def positional_encoding_forward(x: jnp.ndarray, pe: jnp.ndarray) -> jnp.ndarray:
    """x: (S, B, D); pe: (max_len, 1, D) float32 buffer with S <= max_len."""
    s, b, d = x.shape
    out_dtype = jnp.result_type(x.dtype, pe.dtype)   # PyTorch-style promotion

    vmem_cap = _vmem_capacity_bytes()
    ts = _choose_seq_tile(s, b, d, x.dtype, pe.dtype, out_dtype, vmem_cap)
    grid = (pl.cdiv(s, ts),)

    bytes_accessed = (
        s * b * d * (jnp.dtype(x.dtype).itemsize + jnp.dtype(out_dtype).itemsize)
        + s * d * jnp.dtype(pe.dtype).itemsize
    )

    out = pl.pallas_call(
        _pe_add_kernel,
        out_shape=jax.ShapeDtypeStruct((s, b, d), out_dtype),
        grid=grid,
        in_specs=[
            pl.BlockSpec((ts, b, d), lambda i: (i, 0, 0)),   # x, native layout
            pl.BlockSpec((ts, 1, d), lambda i: (i, 0, 0)),   # pe rows; broadcast over B in-kernel
        ],
        out_specs=pl.BlockSpec((ts, b, d), lambda i: (i, 0, 0)),
        compiler_params=pltpu.CompilerParams(
            dimension_semantics=("parallel",),
            vmem_limit_bytes=int(min(vmem_cap * 3 // 4, 64 * 1024 * 1024)),
        ),
        cost_estimate=pl.CostEstimate(
            flops=s * b * d,
            transcendentals=0,
            bytes_accessed=int(bytes_accessed),
        ),
    )(x, pe)
    return out


if __name__ == "__main__":
    # Small shapes consistent with the module's forward: (seq, batch, d_model).
    S, B, D = 8, 2, 32
    MAX_LEN = 64  # stand-in for max_len=5000 at small scale

    key = jax.random.PRNGKey(0)
    x = jax.random.normal(key, (S, B, D), dtype=jnp.float32)

    # Built once, like register_buffer — never re-prepared per forward call.
    pe = jax.block_until_ready(build_pe(D, max_len=MAX_LEN))   # (MAX_LEN, 1, D) f32

    out = positional_encoding_forward(x, pe)
    out = jax.block_until_ready(out)

    # Reference check (pure JAX, mirrors the PyTorch forward exactly).
    ref = x + pe[:S, :]
    assert out.shape == (S, B, D)
    assert out.dtype == jnp.result_type(x.dtype, pe.dtype)
    assert jnp.allclose(out, ref, atol=1e-6), "mismatch vs reference"

    print("KERNEL_OK")
</pallas_src>

<mosaic_0001>
module attributes {stable_mosaic.version = 11 : i64} {
  func.func @_pe_add_kernel(%arg0: i32, %arg1: memref<8x2x32xf32, #tpu.memory_space<vmem>>, %arg2: memref<8x1x32xf32, #tpu.memory_space<vmem>>, %arg3: memref<8x2x32xf32, #tpu.memory_space<vmem>>) attributes {dimension_semantics = [#tpu.dimension_semantics<parallel>], iteration_bounds = array<i64: 1>, scalar_prefetch = 0 : i64, scratch_operands = 0 : i64, tpu.core_type = #tpu.core_type<tc>, window_params = [{transform_indices = @transform_0, window_bounds = array<i64: 8, 2, 32>}, {transform_indices = @transform_1, window_bounds = array<i64: 8, 1, 32>}, {transform_indices = @transform_2, window_bounds = array<i64: 8, 2, 32>}]} {
    %c0 = arith.constant 0 : index
    %c0_0 = arith.constant 0 : index
    %c0_1 = arith.constant 0 : index
    %0 = vector.load %arg1[%c0, %c0_0, %c0_1] : memref<8x2x32xf32, #tpu.memory_space<vmem>>, vector<8x2x32xf32>
    %c0_2 = arith.constant 0 : index
    %c0_3 = arith.constant 0 : index
    %c0_4 = arith.constant 0 : index
    %1 = vector.load %arg2[%c0_2, %c0_3, %c0_4] : memref<8x1x32xf32, #tpu.memory_space<vmem>>, vector<8x1x32xf32>
    %2 = vector.broadcast %1 : vector<8x1x32xf32> to vector<8x2x32xf32>
    %3 = arith.addf %0, %2 : vector<8x2x32xf32>
    %c0_5 = arith.constant 0 : index
    %c0_6 = arith.constant 0 : index
    %c0_7 = arith.constant 0 : index
    %4 = vector.load %arg3[%c0_5, %c0_6, %c0_7] : memref<8x2x32xf32, #tpu.memory_space<vmem>>, vector<8x2x32xf32>
    tpu.vector_store %arg3[%c0_5, %c0_6, %c0_7], %3 {strides = array<i32>} : memref<8x2x32xf32, #tpu.memory_space<vmem>>, vector<8x2x32xf32>,
    return
  }
  func.func @transform_0(%arg0: i32) -> (i32, i32, i32) {
    %c0_i32 = arith.constant 0 : i32
    %c0_i32_0 = arith.constant 0 : i32
    %c0_i32_1 = arith.constant 0 : i32
    return %arg0, %c0_i32, %c0_i32_0 : i32, i32, i32
  }
  func.func @transform_1(%arg0: i32) -> (i32, i32, i32) {
    %c0_i32 = arith.constant 0 : i32
    %c0_i32_0 = arith.constant 0 : i32
    %c0_i32_1 = arith.constant 0 : i32
    return %arg0, %c0_i32, %c0_i32_0 : i32, i32, i32
  }
  func.func @transform_2(%arg0: i32) -> (i32, i32, i32) {
    %c0_i32 = arith.constant 0 : i32
    %c0_i32_0 = arith.constant 0 : i32
    %c0_i32_1 = arith.constant 0 : i32
    return %arg0, %c0_i32, %c0_i32_0 : i32, i32, i32
  }
}

</mosaic_0001>

<llo_original>
// kernel: positional_encoding_forward.1
$region0: #{positional_encoding_forward.1}
  #allocation0 [shape = 'u32[]', space=smem, size = 0x4, offset = 0x4, fixed_abs, tag = 'smem constant byte address 0x4 - core index']
  #allocation1 [shape = 'u32[72,128]{1,0:T(1,128)}', space=vmem, size = 0x9000, scoped, tag = 'internal scratch']
  %s0 = inlined_call_operand.vmem [shape: f32[8,2,32], index: 0, kind: input, shape index: {}]
  %s1 = inlined_call_operand.vmem [shape: f32[64,1,32], index: 1, kind: input, shape index: {}]
  %s2 = inlined_call_operand.hbm [shape: f32[8,2,32], index: 2, kind: output, shape index: {}]
  %s3 = sld [smem:[#allocation0]]
  $region18: #{positional_encoding_forward.1} parent=0
    _
  %s5 = ssub.s32 1, %s3
  %s6 = scalar_select 0, %s5, %s3
  $region1: #{positional_encoding_forward.1} parent=0
    #allocation2 [shape = 'u8[8192]{0}', space=vmem, size = 0x2000, scoped, tag = 'output window, operand 0, single buffered']
    #allocation3 [shape = 's32[1]{0}', space=sflag, size = 0x4, scoped, tag = 'scoped memory for positional_encoding_forward.1']
    %7 = vsyncpa [#allocation3], 0
    // Predicated region
    $region2: #{positional_encoding_forward.1} parent=1 // pred_check
      _
    $region3: #{positional_encoding_forward.1} parent=1 // pred_check_branch
      %9 = sbr.rel (0) target = $region5
    $region4: #{positional_encoding_forward.1} parent=1 // pred_region
      _
    $region5: #{positional_encoding_forward.1} parent=1 // pred_fallthru
      _
    // Predicated region
    $region6: #{positional_encoding_forward.1} parent=1 // pred_check
      _
    $region7: #{positional_encoding_forward.1} parent=1 // pred_check_branch
      %11 = sbr.rel (0) target = $region9
    $region8: #{positional_encoding_forward.1} parent=1 // pred_region
      _
    $region9: #{positional_encoding_forward.1} parent=1 // pred_fallthru
      _
    %v12 = vld [vmem:[%s0] sm:$0x3]
    %v13 = vld [vmem:[%s0 + $0x2] sm:$0x3]
    %v14 = vld [vmem:[%s0 + $0x4] sm:$0x3]
    %v15 = vld [vmem:[%s0 + $0x6] sm:$0x3]
    %v16 = vld [vmem:[%s0 + $0x8] sm:$0x3]
    %v17 = vld [vmem:[%s0 + $0xa] sm:$0x3]
    %v18 = vld [vmem:[%s0 + $0xc] sm:$0x3]
    %v19 = vld [vmem:[%s0 + $0xe] sm:$0x3]
    %v20 = vld [vmem:[%s1] sm:$0x1]
    %v21 = vld [vmem:[%s1 + $0x1] sm:$0x1]
    %v22 = vld [vmem:[%s1 + $0x2] sm:$0x1]
    %v23 = vld [vmem:[%s1 + $0x3] sm:$0x1]
    %v24 = vld [vmem:[%s1 + $0x4] sm:$0x1]
    %v25 = vld [vmem:[%s1 + $0x5] sm:$0x1]
    %v26 = vld [vmem:[%s1 + $0x6] sm:$0x1]
    %v27 = vld [vmem:[%s1 + $0x7] sm:$0x1]
    %v36 = vperm.slane %v20, 0
    %v37 = vperm.slane %v21, 0
    %v38 = vperm.slane %v22, 0
    %v39 = vperm.slane %v23, 0
    %v40 = vperm.slane %v24, 0
    %v41 = vperm.slane %v25, 0
    %v42 = vperm.slane %v26, 0
    %v43 = vperm.slane %v27, 0
    %v52 = vadd.f32 %v12, %v36
    %v53 = vadd.f32 %v13, %v37
    %v54 = vadd.f32 %v14, %v38
    %v55 = vadd.f32 %v15, %v39
    %v56 = vadd.f32 %v16, %v40
    %v57 = vadd.f32 %v17, %v41
    %v58 = vadd.f32 %v18, %v42
    %v59 = vadd.f32 %v19, %v43
    %vm60 = vcmask 254976
    %61 = vst.msk [vmem:[#allocation2] sm:$0x3] %vm60, %v52
    %62 = vst.msk [vmem:[#allocation2 + $0x2] sm:$0x3] %vm60, %v53
    %63 = vst.msk [vmem:[#allocation2 + $0x4] sm:$0x3] %vm60, %v54
    %64 = vst.msk [vmem:[#allocation2 + $0x6] sm:$0x3] %vm60, %v55
    %65 = vst.msk [vmem:[#allocation2 + $0x8] sm:$0x3] %vm60, %v56
    %66 = vst.msk [vmem:[#allocation2 + $0xa] sm:$0x3] %vm60, %v57
    %67 = vst.msk [vmem:[#allocation2 + $0xc] sm:$0x3] %vm60, %v58
    %68 = vst.msk [vmem:[#allocation2 + $0xe] sm:$0x3] %vm60, %v59
    // Predicated region
    $region10: #{positional_encoding_forward.1} parent=1 // pred_check
      _
    $region11: #{positional_encoding_forward.1} parent=1 // pred_check_branch
      %70 = sbr.rel (0) target = $region13
    $region12: #{positional_encoding_forward.1} parent=1 // pred_region
      %72 = vsyncadd [#allocation3], 0
      %s73 = sshll.u32 [#allocation2], 4
      %s74 = int_to_ptr.vmem [resolvable:$true] %s73
      %s75 = sshll.u32 %s2, 4
      %s76 = int_to_ptr.hbm [resolvable:$true] %s75
      %81 = dma.vmem_to_hbm [thread:$0]  %s74, 256, %s76, [#allocation3], 32, 32, 2
    $region13: #{positional_encoding_forward.1} parent=1 // pred_fallthru
      _
    // Predicated region
    $region14: #{positional_encoding_forward.1} parent=1 // pred_check
      _
    $region15: #{positional_encoding_forward.1} parent=1 // pred_check_branch
      %83 = sbr.rel (0) target = $region17
    $region16: #{positional_encoding_forward.1} parent=1 // pred_region
      %85 = dma.done [#allocation3], 256
    $region17: #{positional_encoding_forward.1} parent=1 // pred_fallthru
      _
    %86 = vsyncpa [#allocation3], 1

</llo_original>
